<compile_context>
chip_gen: v7x
topology: tpu7x:2x2x1
jax: 0.10.0
libtpu: 0.0.40
codegen_flags: <defaults>
</compile_context>

<pallas_src>
import functools

import jax
import jax.numpy as jnp
from jax import lax
from jax.experimental import pallas as pl
from jax.experimental.pallas import tpu as pltpu


# Per-block budgets. Native budget sizes the double-buffered input DMA blocks;
# f32 budget bounds the in-kernel cast copy + elementwise temps. Together with
# the 32 MiB scoped VMEM request this stays safe on v7x (64 MiB physical VMEM)
# while letting small-C cases use multi-MiB blocks on v5e/v6e.
_NATIVE_BLOCK_BYTES = 4 * 1024 * 1024
_F32_BLOCK_BYTES = 8 * 1024 * 1024
_VMEM_LIMIT_BYTES = 32 * 1024 * 1024
_MAX_TILE_B = 2048


def _choose_tile_b(b, c, itemsize):
    tb_native = _NATIVE_BLOCK_BYTES // (c * itemsize)   # input block (native dtype)
    tb_f32 = _F32_BLOCK_BYTES // (c * 4)                 # f32 working set
    tb = min(tb_native, tb_f32, _MAX_TILE_B)
    tb = max(8, (tb // 8) * 8)                           # multiple of 8 sublanes
    b_ceil8 = ((b + 7) // 8) * 8                         # no point exceeding batch
    return int(max(8, min(tb, b_ceil8)))


def _ce_label_smooth_kernel(logits_ref, targets_ref, out_ref, *,
                            epsilon, num_classes, tile_b, actual_b, reduction):
    i = pl.program_id(0)

    x = logits_ref[...].astype(jnp.float32)               # (TB, C)
    tgt = targets_ref[...]                                 # (TB, 1) int32

    # Per-row logsumexp (stable).
    m = jnp.max(x, axis=1, keepdims=True)                                 # (TB, 1)
    lse = m + jnp.log(jnp.sum(jnp.exp(x - m), axis=1, keepdims=True))     # (TB, 1)

    # Fused weighted reduction:
    #   smooth = (1-eps)*onehot + eps/C ,  sum(smooth) = 1
    #   loss   = sum(-smooth * (x - lse)) = lse - sum(smooth * x)
    col = lax.broadcasted_iota(jnp.int32, x.shape, 1)                     # (TB, C)
    w = jnp.where(col == tgt,
                  jnp.float32(1.0 - epsilon + epsilon / num_classes),
                  jnp.float32(epsilon / num_classes))
    loss = lse - jnp.sum(x * w, axis=1, keepdims=True)                    # (TB, 1)

    # Ragged last block: no wrapper-side padding, so out-of-range rows contain
    # garbage — zero them before any accumulation / store (where is a select,
    # so NaN/Inf from the discarded branch cannot leak).
    if actual_b % tile_b != 0:
        row = lax.broadcasted_iota(jnp.int32, loss.shape, 0) + i * tile_b
        loss = jnp.where(row < actual_b, loss, 0.0)

    if reduction:
        # Independent per-tile partial sum (finished in the wrapper) — keeps
        # the grid axis "parallel" so v7x can shard it across both TCs.
        out_ref[...] = jnp.sum(loss, keepdims=True)                       # (1, 1)
    else:
        out_ref[...] = loss                                               # (TB, 1)


def cross_entropy_label_smooth(logits, targets, *, num_classes, epsilon=0.1,
                               reduction=True, tile_b=None):
    """Pallas implementation of CrossEntropyLabelSmooth.forward.

    logits:  (B, C) float array (pre-softmax scores)
    targets: (B,)   integer class labels
    Returns: scalar f32 if reduction else (B,) f32 per-sample losses.
    """
    b, c = logits.shape
    assert c == num_classes
    if tile_b is None:
        tile_b = _choose_tile_b(b, c, jnp.dtype(logits.dtype).itemsize)
    tile_b = int(tile_b)
    num_tiles = (b + tile_b - 1) // tile_b

    targets_2d = targets.astype(jnp.int32).reshape(b, 1)

    kernel = functools.partial(
        _ce_label_smooth_kernel,
        epsilon=float(epsilon),
        num_classes=int(num_classes),
        tile_b=tile_b,
        actual_b=int(b),
        reduction=bool(reduction),
    )

    in_specs = [
        pl.BlockSpec((tile_b, c), lambda i: (i, 0)),     # logits tile
        pl.BlockSpec((tile_b, 1), lambda i: (i, 0)),     # targets tile
    ]

    if reduction:
        out_shape = jax.ShapeDtypeStruct((num_tiles, 1), jnp.float32)
        out_specs = pl.BlockSpec((1, 1), lambda i: (i, 0))        # per-tile sum
    else:
        out_shape = jax.ShapeDtypeStruct((b, 1), jnp.float32)
        out_specs = pl.BlockSpec((tile_b, 1), lambda i: (i, 0))   # per-sample

    out = pl.pallas_call(
        kernel,
        out_shape=out_shape,
        grid_spec=pltpu.PrefetchScalarGridSpec(
            num_scalar_prefetch=0,
            grid=(num_tiles,),
            in_specs=in_specs,
            out_specs=out_specs,
        ),
        compiler_params=pltpu.CompilerParams(
            dimension_semantics=("parallel",),
            vmem_limit_bytes=_VMEM_LIMIT_BYTES,
        ),
    )(logits, targets_2d)

    if reduction:
        return jnp.sum(out) / b
    return out.reshape(b)


def _reference(logits, targets, *, num_classes, epsilon=0.1, reduction=True):
    # Pure-JAX reference mirroring the PyTorch module, for verification.
    log_probs = jax.nn.log_softmax(logits.astype(jnp.float32), axis=1)
    onehot = jax.nn.one_hot(targets, num_classes, dtype=jnp.float32)
    smooth = (1.0 - epsilon) * onehot + epsilon / num_classes
    loss = jnp.sum(-smooth * log_probs, axis=1)
    return jnp.mean(loss) if reduction else loss


if __name__ == "__main__":
    epsilon = 0.1
    key = jax.random.PRNGKey(0)

    cases = [
        # (batch, num_classes, reduction, tile_b override, dtype)
        (8, 16, True, None, jnp.float32),    # single tile, mean
        (8, 16, False, None, jnp.float32),   # single tile, per-sample
        (6, 16, True, None, jnp.float32),    # ragged sole block (no pad)
        (6, 16, False, None, jnp.float32),   # ragged sole block, per-sample
        (20, 16, True, 8, jnp.float32),      # multi-tile + ragged last block
        (20, 16, False, 8, jnp.float32),
        (32, 16, True, 8, jnp.float32),      # multi-tile, parallel partial sums
        (32, 16, False, 8, jnp.float32),
        (24, 32, True, 8, jnp.bfloat16),     # dtype-aware path (bf16 input)
    ]

    for batch, num_classes, reduction, tb, dtype in cases:
        key, k1, k2 = jax.random.split(key, 3)
        logits = jax.random.normal(k1, (batch, num_classes)).astype(dtype)
        targets = jax.random.randint(k2, (batch,), 0, num_classes,
                                     dtype=jnp.int32)

        got = cross_entropy_label_smooth(
            logits, targets, num_classes=num_classes, epsilon=epsilon,
            reduction=reduction, tile_b=tb)
        got = jax.block_until_ready(got)

        ref = _reference(logits, targets, num_classes=num_classes,
                         epsilon=epsilon, reduction=reduction)
        tol = 1e-4 if dtype == jnp.bfloat16 else 1e-5
        assert jnp.allclose(got, ref, atol=tol, rtol=tol), (
            batch, num_classes, reduction, dtype, got, ref)

    print("KERNEL_OK")
</pallas_src>

<mosaic_0001>
module attributes {stable_mosaic.version = 11 : i64} {
  func.func @_ce_label_smooth_kernel(%arg0: i32, %arg1: memref<8x16xf32, #tpu.memory_space<vmem>>, %arg2: memref<8x1xi32, #tpu.memory_space<vmem>>, %arg3: memref<1x1xf32, #tpu.memory_space<vmem>>) attributes {dimension_semantics = [#tpu.dimension_semantics<parallel>], iteration_bounds = array<i64: 1>, scalar_prefetch = 0 : i64, scratch_operands = 0 : i64, tpu.core_type = #tpu.core_type<tc>, window_params = [{transform_indices = @transform_0, window_bounds = array<i64: 8, 16>}, {transform_indices = @transform_1, window_bounds = array<i64: 8, 1>}, {transform_indices = @transform_2, window_bounds = array<i64: 1, 1>}]} {
    %c0 = arith.constant 0 : index
    %c0_0 = arith.constant 0 : index
    %0 = vector.load %arg1[%c0, %c0_0] : memref<8x16xf32, #tpu.memory_space<vmem>>, vector<8x16xf32>
    %c0_1 = arith.constant 0 : index
    %c0_2 = arith.constant 0 : index
    %1 = vector.load %arg2[%c0_1, %c0_2] : memref<8x1xi32, #tpu.memory_space<vmem>>, vector<8x1xi32>
    %cst = arith.constant dense<0xFF800000> : vector<8xf32>
    %2 = vector.multi_reduction <maximumf>, %0, %cst [1] : vector<8x16xf32> to vector<8xf32>
    %3 = vector.shape_cast %2 : vector<8xf32> to vector<8x1xf32>
    %4 = vector.broadcast %3 : vector<8x1xf32> to vector<8x16xf32>
    %5 = arith.subf %0, %4 : vector<8x16xf32>
    %6 = math.exp %5 : vector<8x16xf32>
    %cst_3 = arith.constant dense<0.000000e+00> : vector<8xf32>
    %7 = vector.multi_reduction <add>, %6, %cst_3 [1] : vector<8x16xf32> to vector<8xf32>
    %8 = vector.shape_cast %7 : vector<8xf32> to vector<8x1xf32>
    %9 = math.log %8 : vector<8x1xf32>
    %10 = arith.addf %3, %9 : vector<8x1xf32>
    %11 = tpu.iota {dimensions = array<i32: 1>} : vector<8x16xi32>
    %12 = vector.broadcast %1 : vector<8x1xi32> to vector<8x16xi32>
    %13 = arith.cmpi eq, %11, %12 : vector<8x16xi32>
    %cst_4 = arith.constant 9.062500e-01 : f32
    %cst_5 = arith.constant 6.250000e-03 : f32
    %14 = vector.broadcast %cst_4 : f32 to vector<8x16xf32>
    %15 = vector.broadcast %cst_5 : f32 to vector<8x16xf32>
    %16 = arith.select %13, %14, %15 : vector<8x16xi1>, vector<8x16xf32>
    %17 = arith.mulf %0, %16 : vector<8x16xf32>
    %cst_6 = arith.constant dense<0.000000e+00> : vector<8xf32>
    %18 = vector.multi_reduction <add>, %17, %cst_6 [1] : vector<8x16xf32> to vector<8xf32>
    %19 = vector.shape_cast %18 : vector<8xf32> to vector<8x1xf32>
    %20 = arith.subf %10, %19 : vector<8x1xf32>
    %21 = vector.shape_cast %20 : vector<8x1xf32> to vector<1x8x1xf32>
    %cst_7 = arith.constant dense<0.000000e+00> : vector<1xf32>
    %22 = vector.multi_reduction <add>, %21, %cst_7 [1, 2] : vector<1x8x1xf32> to vector<1xf32>
    %23 = vector.shape_cast %22 : vector<1xf32> to vector<1x1x1xf32>
    %24 = vector.extract %23[0, 0, 0] : f32 from vector<1x1x1xf32>
    %25 = vector.broadcast %24 : f32 to vector<1x1xf32>
    %c0_8 = arith.constant 0 : index
    %c0_9 = arith.constant 0 : index
    %26 = vector.load %arg3[%c0_8, %c0_9] : memref<1x1xf32, #tpu.memory_space<vmem>>, vector<1x1xf32>
    tpu.vector_store %arg3[%c0_8, %c0_9], %25 {strides = array<i32>} : memref<1x1xf32, #tpu.memory_space<vmem>>, vector<1x1xf32>,
    return
  }
  func.func @transform_0(%arg0: i32) -> (i32, i32) {
    %c0_i32 = arith.constant 0 : i32
    %c0_i32_0 = arith.constant 0 : i32
    return %arg0, %c0_i32 : i32, i32
  }
  func.func @transform_1(%arg0: i32) -> (i32, i32) {
    %c0_i32 = arith.constant 0 : i32
    %c0_i32_0 = arith.constant 0 : i32
    return %arg0, %c0_i32 : i32, i32
  }
  func.func @transform_2(%arg0: i32) -> (i32, i32) {
    %c0_i32 = arith.constant 0 : i32
    %c0_i32_0 = arith.constant 0 : i32
    return %arg0, %c0_i32 : i32, i32
  }
}

</mosaic_0001>

<llo_original>
// kernel: tpu_custom_call.1
$region0: #{tpu_custom_call.1}
  #allocation0 [shape = 'u32[]', space=smem, size = 0x4, offset = 0x4, fixed_abs, tag = 'smem constant byte address 0x4 - core index']
  #allocation1 [shape = 'u32[144,128]{1,0:T(1,128)}', space=vmem, size = 0x12000, scoped, tag = 'internal scratch']
  %s0 = inlined_call_operand.vmem [shape: f32[8,16], index: 0, kind: input, shape index: {}]
  %s1 = inlined_call_operand.vmem [shape: s32[8,1], index: 1, kind: input, shape index: {}]
  %s2 = inlined_call_operand.hbm [shape: f32[1,1], index: 2, kind: output, shape index: {}]
  %s3 = sld [smem:[#allocation0]]
  $region18: #{tpu_custom_call.1} parent=0
    _
  %s5 = ssub.s32 1, %s3
  %s6 = scalar_select 0, %s5, %s3
  $region1: #{tpu_custom_call.1} parent=0
    #allocation2 [shape = 'u8[512]{0}', space=vmem, size = 0x400, scoped, tag = 'output window, operand 0, single buffered']
    #allocation3 [shape = 's32[1]{0}', space=sflag, size = 0x4, scoped, tag = 'scoped memory for tpu_custom_call.1']
    %7 = vsyncpa [#allocation3], 0
    // Predicated region
    $region2: #{tpu_custom_call.1} parent=1 // pred_check
      _
    $region3: #{tpu_custom_call.1} parent=1 // pred_check_branch
      %9 = sbr.rel (0) target = $region5
    $region4: #{tpu_custom_call.1} parent=1 // pred_region
      _
    $region5: #{tpu_custom_call.1} parent=1 // pred_fallthru
      _
    // Predicated region
    $region6: #{tpu_custom_call.1} parent=1 // pred_check
      _
    $region7: #{tpu_custom_call.1} parent=1 // pred_check_branch
      %11 = sbr.rel (0) target = $region9
    $region8: #{tpu_custom_call.1} parent=1 // pred_region
      _
    $region9: #{tpu_custom_call.1} parent=1 // pred_fallthru
      _
    %v12 = vld [vmem:[%s0] sm:$0xff]
    %v13 = vld [vmem:[%s1] sm:$0xff]
    %vm14 = vcmask 130048
    %v15 = vsel %vm14, %v12, -inf
    %16 = vmax.xlane.f32.xlu0 %v15
    %v17 = vpop.xlane.xlu0 %16
    %v18 = vsub.f32 %v12, %v17
    %v19 = vmul.f32 %v18, 1.442695
    %v20 = vpow.pop %v19
    %v21 = vsel %vm14, %v20, 0.0
    %22 = vadd.xlane.f32.xlu0 %v21
    %v23 = vpop.xlane.xlu0 %22
    %v24 = vlog2.pop %v23
    %v25 = vmul.f32 %v24, 0.6931472
    %v26 = vadd.f32 %v17, %v25
    %v27 = vlaneseq
    %v28 = vand.u32 %v27, 127
    %29 = vset.pattern.permute.xlu0 0
    %30 = vperm.xlu0 %29, %v13
    %v31 = vpop.permute.xlu0 %30
    %vm32 = vcmp.eq.s32.totalorder %v28, %v31
    %v33 = vsel %vm32, 0.90625, 0.00625
    %v34 = vmul.f32 %v12, %v33
    %v35 = vsel %vm14, %v34, 0.0
    %36 = vadd.xlane.f32.xlu0 %v35
    %v37 = vpop.xlane.xlu0 %36
    %v38 = vsub.f32 %v26, %v37
    %vm39 = vcmask 7168
    %v40 = vsel %vm39, %v38, 0.0
    %41 = vadd.xlane.f32.xlu0 %v40
    %v42 = vpop.xlane.xlu0 %41
    %v43 = vrot.slane %v42, 4
    %v44 = vadd.f32 %v42, %v43
    %v45 = vrot.slane %v44, 2
    %v46 = vadd.f32 %v44, %v45
    %v47 = vrot.slane %v46, 1
    %v48 = vadd.f32 %v46, %v47
    %s49 = vtos %v48
    %v50 = vstv %s49
    %vm51 = vcmask 0
    %52 = vst.msk [vmem:[#allocation2] sm:$0x1] %vm51, %v50
    // Predicated region
    $region10: #{tpu_custom_call.1} parent=1 // pred_check
      _
    $region11: #{tpu_custom_call.1} parent=1 // pred_check_branch
      %54 = sbr.rel (0) target = $region13
    $region12: #{tpu_custom_call.1} parent=1 // pred_region
      %s56 = ssub.s32 16, 16
      %57 = vsyncadd [#allocation3], %s56
      %s59 = sshll.u32 [#allocation2], 4
      %s60 = int_to_ptr.vmem [resolvable:$true] %s59
      %62 = dma.vmem_to_hbm [thread:$0]  %s60, 16, %s2, [#allocation3]
    $region13: #{tpu_custom_call.1} parent=1 // pred_fallthru
      _
    // Predicated region
    $region14: #{tpu_custom_call.1} parent=1 // pred_check
      _
    $region15: #{tpu_custom_call.1} parent=1 // pred_check_branch
      %64 = sbr.rel (0) target = $region17
    $region16: #{tpu_custom_call.1} parent=1 // pred_region
      %65 = dma.done [#allocation3], 16
    $region17: #{tpu_custom_call.1} parent=1 // pred_fallthru
      _
    %66 = vsyncpa [#allocation3], 1

</llo_original>
